<compile_context>
chip_gen: v7x
topology: tpu7x:2x2x1
jax: 0.10.0
libtpu: 0.0.40
codegen_flags: <defaults>
</compile_context>

<pallas_src>
import jax
import jax.numpy as jnp
from jax.experimental import pallas as pl
from jax.experimental.pallas import tpu as pltpu


def _euclidean_projection_kernel(x_ref, o_ref):
    # x_ref: (D, TL) block in VMEM ; o_ref: (D-1, TL) block in VMEM
    x = x_ref[...]
    scale = jnp.exp(x[0:1, :])          # exp only on the cartan row (1, TL)
    o_ref[...] = x[1:, :] * scale       # sublane broadcast, lane-dense store


def euclidean_projection(x: jax.Array, *, target_block_bytes: int = 2 * 1024 * 1024) -> jax.Array:
    """x: (..., D) -> (..., D-1), computed as fiber * exp(cartan)."""
    orig_shape = x.shape
    D = orig_shape[-1]
    lead = orig_shape[:-1]
    N = 1
    for d in lead:
        N *= d

    if D <= 1:
        # Empty fiber: nothing to compute.
        return jnp.zeros(lead + (max(D - 1, 0),), dtype=x.dtype)

    # ---- layout plumbing: flatten rows, put them on the lane axis ----
    x2 = x.reshape(N, D)
    xt = x2.T                            # (D, N)

    itemsize = jnp.dtype(x.dtype).itemsize
    # Lane tile: multiple of 128, sized so each input block is ~target_block_bytes.
    tl = max(128, (target_block_bytes // (D * itemsize)) // 128 * 128)
    n_pad128 = pl.cdiv(N, 128) * 128
    tl = min(tl, n_pad128)
    n_pad = pl.cdiv(N, tl) * tl          # pad flattened axis to a multiple of TL
    if n_pad != N:
        xt = jnp.pad(xt, ((0, 0), (0, n_pad - N)))

    grid = (n_pad // tl,)

    out_t = pl.pallas_call(
        _euclidean_projection_kernel,
        out_shape=jax.ShapeDtypeStruct((D - 1, n_pad), x.dtype),
        grid_spec=pltpu.PrefetchScalarGridSpec(
            num_scalar_prefetch=0,
            grid=grid,
            # Second-to-last block dim equals the full array dim (D / D-1), so
            # only the lane tile TL needs to be a multiple of 128.
            in_specs=[pl.BlockSpec((D, tl), lambda i: (0, i))],
            out_specs=pl.BlockSpec((D - 1, tl), lambda i: (0, i)),
        ),
        compiler_params=pltpu.CompilerParams(
            dimension_semantics=("parallel",),
        ),
    )(xt)

    out = out_t[:, :N].T                 # (N, D-1)
    return out.reshape(lead + (D - 1,))


def euclidean_projection_ref(x: jax.Array) -> jax.Array:
    # Pure-JAX reference for correctness checking.
    return x[..., 1:] * jnp.exp(x[..., :1])


if __name__ == "__main__":
    key = jax.random.PRNGKey(0)

    # Small shape consistent with the module (batch=2, seq=8, hidden=32).
    B, S, D = 2, 8, 32
    x = jax.random.normal(key, (B, S, D), dtype=jnp.float32)

    out = euclidean_projection(x)
    out = jax.block_until_ready(out)

    ref = euclidean_projection_ref(x)
    assert out.shape == (B, S, D - 1), out.shape
    assert jnp.allclose(out, ref, atol=1e-6, rtol=1e-6), "mismatch vs reference"

    # Exercise the multi-block grid path (several lane tiles) and padding path.
    k1, k2 = jax.random.split(key)
    x2 = jax.random.normal(k1, (4, 256, 64), dtype=jnp.float32)
    out2 = jax.block_until_ready(
        euclidean_projection(x2, target_block_bytes=64 * 1024)
    )
    assert out2.shape == (4, 256, 63), out2.shape
    assert jnp.allclose(out2, euclidean_projection_ref(x2), atol=1e-6, rtol=1e-6)

    x3 = jax.random.normal(k2, (3, 10, 7), dtype=jnp.float32)  # odd D, padded N
    out3 = jax.block_until_ready(euclidean_projection(x3))
    assert out3.shape == (3, 10, 6), out3.shape
    assert jnp.allclose(out3, euclidean_projection_ref(x3), atol=1e-6, rtol=1e-6)

    print("KERNEL_OK")
</pallas_src>

<mosaic_0001>
module attributes {stable_mosaic.version = 11 : i64} {
  func.func @_euclidean_projection_kernel(%arg0: i32, %arg1: memref<32x128xf32, #tpu.memory_space<vmem>>, %arg2: memref<31x128xf32, #tpu.memory_space<vmem>>) attributes {dimension_semantics = [#tpu.dimension_semantics<parallel>], iteration_bounds = array<i64: 1>, scalar_prefetch = 0 : i64, scratch_operands = 0 : i64, tpu.core_type = #tpu.core_type<tc>, window_params = [{transform_indices = @transform_0, window_bounds = array<i64: 32, 128>}, {transform_indices = @transform_1, window_bounds = array<i64: 31, 128>}]} {
    %c0 = arith.constant 0 : index
    %c0_0 = arith.constant 0 : index
    %0 = vector.load %arg1[%c0, %c0_0] : memref<32x128xf32, #tpu.memory_space<vmem>>, vector<32x128xf32>
    %1 = vector.extract_strided_slice %0 {offsets = [0, 0], sizes = [1, 128], strides = [1, 1]} : vector<32x128xf32> to vector<1x128xf32>
    %2 = math.exp %1 : vector<1x128xf32>
    %3 = vector.extract_strided_slice %0 {offsets = [1, 0], sizes = [31, 128], strides = [1, 1]} : vector<32x128xf32> to vector<31x128xf32>
    %4 = vector.broadcast %2 : vector<1x128xf32> to vector<31x128xf32>
    %5 = arith.mulf %3, %4 : vector<31x128xf32>
    %c0_1 = arith.constant 0 : index
    %c0_2 = arith.constant 0 : index
    %6 = vector.load %arg2[%c0_1, %c0_2] : memref<31x128xf32, #tpu.memory_space<vmem>>, vector<31x128xf32>
    tpu.vector_store %arg2[%c0_1, %c0_2], %5 {strides = array<i32>} : memref<31x128xf32, #tpu.memory_space<vmem>>, vector<31x128xf32>,
    return
  }
  func.func @transform_0(%arg0: i32) -> (i32, i32) {
    %c0_i32 = arith.constant 0 : i32
    %c0_i32_0 = arith.constant 0 : i32
    return %c0_i32, %arg0 : i32, i32
  }
  func.func @transform_1(%arg0: i32) -> (i32, i32) {
    %c0_i32 = arith.constant 0 : i32
    %c0_i32_0 = arith.constant 0 : i32
    return %c0_i32, %arg0 : i32, i32
  }
}

</mosaic_0001>

<llo_original>
// kernel: tpu_custom_call.1
$region0: #{tpu_custom_call.1}
  #allocation0 [shape = 'u32[]', space=smem, size = 0x4, offset = 0x4, fixed_abs, tag = 'smem constant byte address 0x4 - core index']
  #allocation1 [shape = 'u32[144,128]{1,0:T(1,128)}', space=vmem, size = 0x12000, scoped, tag = 'internal scratch']
  %s0 = inlined_call_operand.hbm [shape: f32[32,128], index: 0, kind: input, shape index: {}]
  %s1 = inlined_call_operand.hbm [shape: f32[31,128], index: 1, kind: output, shape index: {}]
  %s2 = sld [smem:[#allocation0]]
  $region18: #{tpu_custom_call.1} parent=0
    _
  %s4 = ssub.s32 1, %s2
  %s5 = scalar_select 0, %s4, %s2
  $region1: #{tpu_custom_call.1} parent=0
    #allocation2 [shape = 'u8[16384]{0}', space=vmem, size = 0x4000, scoped, tag = 'input window, operand 0, single buffered']
    #allocation3 [shape = 's32[1]{0}', space=sflag, size = 0x4, scoped, tag = 'scoped memory for tpu_custom_call.1']
    #allocation4 [shape = 's32[1]{0}', space=sflag, size = 0x4, scoped, tag = 'scoped memory for tpu_custom_call.1']
    #allocation5 [shape = 'u8[16384]{0}', space=vmem, size = 0x4000, scoped, tag = 'output window, operand 0, single buffered']
    %6 = vsyncpa [#allocation3], 0
    %7 = vsyncpa [#allocation4], 0
    // Predicated region
    $region2: #{tpu_custom_call.1} parent=1 // pred_check
      _
    $region3: #{tpu_custom_call.1} parent=1 // pred_check_branch
      %9 = sbr.rel (0) target = $region5
    $region4: #{tpu_custom_call.1} parent=1 // pred_region
      %s11 = ssub.s32 512, 512
      %12 = vsyncadd [#allocation3], %s11
      %s13 = sshll.u32 [#allocation2], 4
      %s14 = int_to_ptr.vmem [resolvable:$true] %s13
      %19 = dma.hbm_to_vmem [thread:$0]  %s0, 512, %s14, [#allocation3], 128, 128, 8
    $region5: #{tpu_custom_call.1} parent=1 // pred_fallthru
      _
    // Predicated region
    $region6: #{tpu_custom_call.1} parent=1 // pred_check
      _
    $region7: #{tpu_custom_call.1} parent=1 // pred_check_branch
      %21 = sbr.rel (0) target = $region9
    $region8: #{tpu_custom_call.1} parent=1 // pred_region
      %22 = dma.done [#allocation3], 512
    $region9: #{tpu_custom_call.1} parent=1 // pred_fallthru
      _
    %v23 = vld [vmem:[#allocation2] sm:$0xff]
    %v24 = vld [vmem:[#allocation2 + $0x8] sm:$0xff]
    %v25 = vld [vmem:[#allocation2 + $0x10] sm:$0xff]
    %v26 = vld [vmem:[#allocation2 + $0x18] sm:$0xff]
    %v27 = vmul.f32 %v23, 1.442695
    %v28 = vpow.pop %v27
    %v29 = vlaneseq
    %v30 = vshrl.u32 %v29, 7
    %v31 = vsub.s32 0, %v30
    %v32 = vrot.slane %v28, %v31
    %v33 = vmul.f32 %v23, %v32
    %v34 = vmul.f32 %v24, %v32
    %v35 = vmul.f32 %v25, %v32
    %v36 = vmul.f32 %v26, %v32
    %37 = vst [vmem:[#allocation5 - $0x1] sm:$0xfe] %v33
    %38 = vst [vmem:[#allocation5 + $0x7] sm:$0xff] %v34
    %39 = vst [vmem:[#allocation5 + $0xf] sm:$0xff] %v35
    %40 = vst [vmem:[#allocation5 + $0x17] sm:$0xff] %v36
    // Predicated region
    $region10: #{tpu_custom_call.1} parent=1 // pred_check
      _
    $region11: #{tpu_custom_call.1} parent=1 // pred_check_branch
      %42 = sbr.rel (0) target = $region13
    $region12: #{tpu_custom_call.1} parent=1 // pred_region
      %s44 = ssub.s32 512, 512
      %45 = vsyncadd [#allocation4], %s44
      %s46 = sshll.u32 [#allocation5], 4
      %s47 = int_to_ptr.vmem [resolvable:$true] %s46
      %52 = dma.vmem_to_hbm [thread:$0]  %s47, 512, %s1, [#allocation4], 128, 128, 8
    $region13: #{tpu_custom_call.1} parent=1 // pred_fallthru
      _
    // Predicated region
    $region14: #{tpu_custom_call.1} parent=1 // pred_check
      _
    $region15: #{tpu_custom_call.1} parent=1 // pred_check_branch
      %54 = sbr.rel (0) target = $region17
    $region16: #{tpu_custom_call.1} parent=1 // pred_region
      %55 = dma.done [#allocation4], 512
    $region17: #{tpu_custom_call.1} parent=1 // pred_fallthru
      _
    %56 = vsyncpa [#allocation3], 1
    %57 = vsyncpa [#allocation4], 1

</llo_original>
